<compile_context>
chip_gen: v7x
topology: tpu7x:2x2x1
jax: 0.10.0
libtpu: 0.0.40
codegen_flags: <defaults>
</compile_context>

<pallas_src>
import jax
import jax.numpy as jnp
from jax.experimental import pallas as pl
from jax.experimental.pallas import tpu as pltpu

BN_EPS = 1e-5


# ------------------------------ Pallas kernel -------------------------------

def _attention_gate_kernel(g_ref, x_ref, wg_ref, bg_ref, wx_ref, bx_ref,
                           wp_ref, bp_ref, o_ref):
    """Fused W_g / W_x / psi / gating for one tile of pixels.

    Shapes inside the kernel (TM = pixel tile, lane axis):
      g_ref : (F_g, TM)      x_ref : (F_l, TM)
      wg_ref: (F_int, F_g)   bg_ref: (F_int, 1)     (BN already folded in)
      wx_ref: (F_int, F_l)   bx_ref: (F_int, 1)
      wp_ref: (F_int, 1)     bp_ref: (1, 1)
      o_ref : (F_l, TM)
    """
    g = g_ref[...]
    x = x_ref[...]

    # 1x1 conv + folded BN for both branches (MXU, f32 accumulation).
    g1 = jnp.dot(wg_ref[...], g, preferred_element_type=jnp.float32) + bg_ref[...]
    x1 = jnp.dot(wx_ref[...], x, preferred_element_type=jnp.float32) + bx_ref[...]

    p = jnp.maximum(g1 + x1, 0.0)                                   # ReLU  (F_int, TM)

    # psi 1x1 conv (F_int -> 1) as a sublane reduction + folded BN + sigmoid.
    psi = jnp.sum(p * wp_ref[...], axis=0, keepdims=True) + bp_ref[...]   # (1, TM)
    psi = 1.0 / (1.0 + jnp.exp(-psi))                               # sigmoid

    # Gate: broadcast the (1, TM) attention map over the F_l sublanes.
    o_ref[...] = x * psi


def _pick_tile(m):
    # Lane-dense tile over the pixel axis; fall back to the full axis when small.
    for t in (1024, 512, 256, 128):
        if m % t == 0:
            return t
    return m


def attention_block(g, x, params):
    """g: (B, F_g, H, W), x: (B, F_l, H, W)  ->  (B, F_l, H, W)."""
    B, F_g, H, W = g.shape
    F_l = x.shape[1]
    F_int = params["wg"].shape[0]
    M = B * H * W
    TM = _pick_tile(M)

    # NCHW -> (C, B*H*W): channels on sublanes, pixels on lanes (lane-dense everywhere).
    g2 = g.transpose(1, 0, 2, 3).reshape(F_g, M).astype(jnp.float32)
    x2 = x.transpose(1, 0, 2, 3).reshape(F_l, M).astype(jnp.float32)

    res = pl.pallas_call(
        _attention_gate_kernel,
        grid=(M // TM,),
        in_specs=[
            pl.BlockSpec((F_g, TM), lambda i: (0, i)),
            pl.BlockSpec((F_l, TM), lambda i: (0, i)),
            pl.BlockSpec((F_int, F_g), lambda i: (0, 0)),
            pl.BlockSpec((F_int, 1), lambda i: (0, 0)),
            pl.BlockSpec((F_int, F_l), lambda i: (0, 0)),
            pl.BlockSpec((F_int, 1), lambda i: (0, 0)),
            pl.BlockSpec((F_int, 1), lambda i: (0, 0)),
            pl.BlockSpec((1, 1), lambda i: (0, 0)),
        ],
        out_specs=pl.BlockSpec((F_l, TM), lambda i: (0, i)),
        out_shape=jax.ShapeDtypeStruct((F_l, M), jnp.float32),
        compiler_params=pltpu.CompilerParams(
            dimension_semantics=("parallel",)),   # megacore sharding on v7x
    )(g2, x2, params["wg"], params["bg"], params["wx"], params["bx"],
      params["wp"], params["bp"])

    return res.reshape(F_l, B, H, W).transpose(1, 0, 2, 3)


# ------------------------------- parameters ---------------------------------

def _fold_conv_bn(w, b, gamma, beta, rm, rv):
    """Fold eval-mode BatchNorm into the preceding 1x1 conv (one-time preprocessing)."""
    # TODO(synk): training-mode BatchNorm (batch statistics) would need a cross-batch
    # reduction pass; this reproduces eval() semantics with running stats.
    scale = gamma / jnp.sqrt(rv + BN_EPS)               # (Cout,)
    w_f = w * scale[:, None]                            # (Cout, Cin)
    b_f = b * scale + beta - rm * scale                 # (Cout,)
    return w_f, b_f


def build_params(key, F_g, F_l, F_int):
    ks = iter(jax.random.split(key, 32))

    def rnd(shape, s=0.1):
        return jax.random.normal(next(ks), shape, jnp.float32) * s

    raw = {
        # conv weights stored as (Cout, Cin) (1x1 kernels squeezed)
        "wg": rnd((F_int, F_g)), "bg": rnd((F_int,)),
        "gg": 1.0 + rnd((F_int,)), "betag": rnd((F_int,)),
        "rmg": rnd((F_int,)), "rvg": 0.5 + jax.random.uniform(next(ks), (F_int,)),

        "wx": rnd((F_int, F_l)), "bx": rnd((F_int,)),
        "gx": 1.0 + rnd((F_int,)), "betax": rnd((F_int,)),
        "rmx": rnd((F_int,)), "rvx": 0.5 + jax.random.uniform(next(ks), (F_int,)),

        "wp": rnd((1, F_int)), "bp": rnd((1,)),
        "gp": 1.0 + rnd((1,)), "betap": rnd((1,)),
        "rmp": rnd((1,)), "rvp": 0.5 + jax.random.uniform(next(ks), (1,)),
    }

    wg, bg = _fold_conv_bn(raw["wg"], raw["bg"], raw["gg"], raw["betag"], raw["rmg"], raw["rvg"])
    wx, bx = _fold_conv_bn(raw["wx"], raw["bx"], raw["gx"], raw["betax"], raw["rmx"], raw["rvx"])
    wp, bp = _fold_conv_bn(raw["wp"], raw["bp"], raw["gp"], raw["betap"], raw["rmp"], raw["rvp"])

    folded = {
        "wg": wg, "bg": bg.reshape(F_int, 1),
        "wx": wx, "bx": bx.reshape(F_int, 1),
        "wp": wp.reshape(F_int, 1),            # (1, F_int) -> (F_int, 1) column for sublane reduce
        "bp": bp.reshape(1, 1),
    }
    return raw, folded


# ------------------------------ pure-JAX reference ---------------------------

def reference(g, x, raw):
    hp = jax.lax.Precision.HIGHEST

    def conv_bn(t, w, b, gamma, beta, rm, rv):
        y = jnp.einsum("bchw,oc->bohw", t, w, precision=hp) + b[None, :, None, None]
        scale = gamma / jnp.sqrt(rv + BN_EPS)
        return y * scale[None, :, None, None] + (beta - rm * scale)[None, :, None, None]

    g1 = conv_bn(g, raw["wg"], raw["bg"], raw["gg"], raw["betag"], raw["rmg"], raw["rvg"])
    x1 = conv_bn(x, raw["wx"], raw["bx"], raw["gx"], raw["betax"], raw["rmx"], raw["rvx"])
    p = jnp.maximum(g1 + x1, 0.0)
    psi = conv_bn(p, raw["wp"], raw["bp"], raw["gp"], raw["betap"], raw["rmp"], raw["rvp"])
    psi = jax.nn.sigmoid(psi)
    return x * psi


# ----------------------------------- main ------------------------------------

if __name__ == "__main__":
    B, F_g, F_l, F_int, H, W = 2, 64, 64, 32, 16, 16

    key = jax.random.PRNGKey(0)
    pkey, gkey, xkey = jax.random.split(key, 3)
    raw, folded = build_params(pkey, F_g, F_l, F_int)

    g = jax.random.normal(gkey, (B, F_g, H, W), jnp.float32)
    x = jax.random.normal(xkey, (B, F_l, H, W), jnp.float32)

    out = attention_block(g, x, folded)
    out = jax.block_until_ready(out)

    assert out.shape == (B, F_l, H, W), out.shape
    assert bool(jnp.all(jnp.isfinite(out)))

    ref = jax.block_until_ready(reference(g, x, raw))
    assert bool(jnp.allclose(out, ref, rtol=1e-2, atol=1e-2)), \
        float(jnp.max(jnp.abs(out - ref)))

    print("KERNEL_OK")
</pallas_src>

<mosaic_0001>
module attributes {stable_mosaic.version = 11 : i64} {
  func.func @_attention_gate_kernel(%arg0: i32, %arg1: memref<64x512xf32, #tpu.memory_space<vmem>>, %arg2: memref<64x512xf32, #tpu.memory_space<vmem>>, %arg3: memref<32x64xf32, #tpu.memory_space<vmem>>, %arg4: memref<32x1xf32, #tpu.memory_space<vmem>>, %arg5: memref<32x64xf32, #tpu.memory_space<vmem>>, %arg6: memref<32x1xf32, #tpu.memory_space<vmem>>, %arg7: memref<32x1xf32, #tpu.memory_space<vmem>>, %arg8: memref<1x1xf32, #tpu.memory_space<vmem>>, %arg9: memref<64x512xf32, #tpu.memory_space<vmem>>) attributes {dimension_semantics = [#tpu.dimension_semantics<parallel>], iteration_bounds = array<i64: 1>, scalar_prefetch = 0 : i64, scratch_operands = 0 : i64, tpu.core_type = #tpu.core_type<tc>, window_params = [{transform_indices = @transform_0, window_bounds = array<i64: 64, 512>}, {transform_indices = @transform_1, window_bounds = array<i64: 64, 512>}, {pipeline_mode = #tpu.pipeline_mode<synchronous>, transform_indices = @transform_2, window_bounds = array<i64: 32, 64>}, {pipeline_mode = #tpu.pipeline_mode<synchronous>, transform_indices = @transform_3, window_bounds = array<i64: 32, 1>}, {pipeline_mode = #tpu.pipeline_mode<synchronous>, transform_indices = @transform_4, window_bounds = array<i64: 32, 64>}, {pipeline_mode = #tpu.pipeline_mode<synchronous>, transform_indices = @transform_5, window_bounds = array<i64: 32, 1>}, {pipeline_mode = #tpu.pipeline_mode<synchronous>, transform_indices = @transform_6, window_bounds = array<i64: 32, 1>}, {pipeline_mode = #tpu.pipeline_mode<synchronous>, transform_indices = @transform_7, window_bounds = array<i64: 1, 1>}, {transform_indices = @transform_8, window_bounds = array<i64: 64, 512>}]} {
    %c0 = arith.constant 0 : index
    %c0_0 = arith.constant 0 : index
    %0 = vector.load %arg1[%c0, %c0_0] : memref<64x512xf32, #tpu.memory_space<vmem>>, vector<64x512xf32>
    %c0_1 = arith.constant 0 : index
    %c0_2 = arith.constant 0 : index
    %1 = vector.load %arg2[%c0_1, %c0_2] : memref<64x512xf32, #tpu.memory_space<vmem>>, vector<64x512xf32>
    %c0_3 = arith.constant 0 : index
    %c0_4 = arith.constant 0 : index
    %2 = vector.load %arg3[%c0_3, %c0_4] : memref<32x64xf32, #tpu.memory_space<vmem>>, vector<32x64xf32>
    %cst = arith.constant dense<0.000000e+00> : vector<32x512xf32>
    %3 = tpu.matmul %2, %0, %cst {dimension_numbers = #tpu.dot_dimension_numbers<[1], [0], [0], [1], [0, 0, 1, 1], [], []>} : vector<32x64xf32>, vector<64x512xf32>, vector<32x512xf32> -> vector<32x512xf32>
    %c0_5 = arith.constant 0 : index
    %c0_6 = arith.constant 0 : index
    %4 = vector.load %arg4[%c0_5, %c0_6] : memref<32x1xf32, #tpu.memory_space<vmem>>, vector<32x1xf32>
    %5 = vector.broadcast %4 : vector<32x1xf32> to vector<32x512xf32>
    %6 = arith.addf %3, %5 : vector<32x512xf32>
    %c0_7 = arith.constant 0 : index
    %c0_8 = arith.constant 0 : index
    %7 = vector.load %arg5[%c0_7, %c0_8] : memref<32x64xf32, #tpu.memory_space<vmem>>, vector<32x64xf32>
    %cst_9 = arith.constant dense<0.000000e+00> : vector<32x512xf32>
    %8 = tpu.matmul %7, %1, %cst_9 {dimension_numbers = #tpu.dot_dimension_numbers<[1], [0], [0], [1], [0, 0, 1, 1], [], []>} : vector<32x64xf32>, vector<64x512xf32>, vector<32x512xf32> -> vector<32x512xf32>
    %c0_10 = arith.constant 0 : index
    %c0_11 = arith.constant 0 : index
    %9 = vector.load %arg6[%c0_10, %c0_11] : memref<32x1xf32, #tpu.memory_space<vmem>>, vector<32x1xf32>
    %10 = vector.broadcast %9 : vector<32x1xf32> to vector<32x512xf32>
    %11 = arith.addf %8, %10 : vector<32x512xf32>
    %12 = arith.addf %6, %11 : vector<32x512xf32>
    %cst_12 = arith.constant 0.000000e+00 : f32
    %13 = vector.broadcast %cst_12 : f32 to vector<32x512xf32>
    %14 = arith.maximumf %12, %13 : vector<32x512xf32>
    %c0_13 = arith.constant 0 : index
    %c0_14 = arith.constant 0 : index
    %15 = vector.load %arg7[%c0_13, %c0_14] : memref<32x1xf32, #tpu.memory_space<vmem>>, vector<32x1xf32>
    %16 = vector.broadcast %15 : vector<32x1xf32> to vector<32x512xf32>
    %17 = arith.mulf %14, %16 : vector<32x512xf32>
    %cst_15 = arith.constant dense<0.000000e+00> : vector<512xf32>
    %18 = vector.multi_reduction <add>, %17, %cst_15 [0] : vector<32x512xf32> to vector<512xf32>
    %19 = vector.shape_cast %18 : vector<512xf32> to vector<1x512xf32>
    %c0_16 = arith.constant 0 : index
    %c0_17 = arith.constant 0 : index
    %20 = vector.load %arg8[%c0_16, %c0_17] : memref<1x1xf32, #tpu.memory_space<vmem>>, vector<1x1xf32>
    %21 = vector.broadcast %20 : vector<1x1xf32> to vector<1x512xf32>
    %22 = arith.addf %19, %21 : vector<1x512xf32>
    %cst_18 = arith.constant 0.000000e+00 : f32
    %23 = vector.broadcast %cst_18 : f32 to vector<1x512xf32>
    %24 = arith.subf %23, %22 : vector<1x512xf32>
    %25 = math.exp %24 : vector<1x512xf32>
    %cst_19 = arith.constant 1.000000e+00 : f32
    %26 = vector.broadcast %cst_19 : f32 to vector<1x512xf32>
    %27 = arith.addf %26, %25 : vector<1x512xf32>
    %cst_20 = arith.constant 1.000000e+00 : f32
    %28 = vector.broadcast %cst_20 : f32 to vector<1x512xf32>
    %29 = arith.divf %28, %27 : vector<1x512xf32>
    %30 = vector.broadcast %29 : vector<1x512xf32> to vector<64x512xf32>
    %31 = arith.mulf %1, %30 : vector<64x512xf32>
    %c0_21 = arith.constant 0 : index
    %c0_22 = arith.constant 0 : index
    %32 = vector.load %arg9[%c0_21, %c0_22] : memref<64x512xf32, #tpu.memory_space<vmem>>, vector<64x512xf32>
    tpu.vector_store %arg9[%c0_21, %c0_22], %31 {strides = array<i32>} : memref<64x512xf32, #tpu.memory_space<vmem>>, vector<64x512xf32>,
    return
  }
  func.func @transform_0(%arg0: i32) -> (i32, i32) {
    %c0_i32 = arith.constant 0 : i32
    %c0_i32_0 = arith.constant 0 : i32
    return %c0_i32, %arg0 : i32, i32
  }
  func.func @transform_1(%arg0: i32) -> (i32, i32) {
    %c0_i32 = arith.constant 0 : i32
    %c0_i32_0 = arith.constant 0 : i32
    return %c0_i32, %arg0 : i32, i32
  }
  func.func @transform_2(%arg0: i32) -> (i32, i32) {
    %c0_i32 = arith.constant 0 : i32
    %c0_i32_0 = arith.constant 0 : i32
    %c0_i32_1 = arith.constant 0 : i32
    return %c0_i32, %c0_i32_0 : i32, i32
  }
  func.func @transform_3(%arg0: i32) -> (i32, i32) {
    %c0_i32 = arith.constant 0 : i32
    %c0_i32_0 = arith.constant 0 : i32
    %c0_i32_1 = arith.constant 0 : i32
    return %c0_i32, %c0_i32_0 : i32, i32
  }
  func.func @transform_4(%arg0: i32) -> (i32, i32) {
    %c0_i32 = arith.constant 0 : i32
    %c0_i32_0 = arith.constant 0 : i32
    %c0_i32_1 = arith.constant 0 : i32
    return %c0_i32, %c0_i32_0 : i32, i32
  }
  func.func @transform_5(%arg0: i32) -> (i32, i32) {
    %c0_i32 = arith.constant 0 : i32
    %c0_i32_0 = arith.constant 0 : i32
    %c0_i32_1 = arith.constant 0 : i32
    return %c0_i32, %c0_i32_0 : i32, i32
  }
  func.func @transform_6(%arg0: i32) -> (i32, i32) {
    %c0_i32 = arith.constant 0 : i32
    %c0_i32_0 = arith.constant 0 : i32
    %c0_i32_1 = arith.constant 0 : i32
    return %c0_i32, %c0_i32_0 : i32, i32
  }
  func.func @transform_7(%arg0: i32) -> (i32, i32) {
    %c0_i32 = arith.constant 0 : i32
    %c0_i32_0 = arith.constant 0 : i32
    %c0_i32_1 = arith.constant 0 : i32
    return %c0_i32, %c0_i32_0 : i32, i32
  }
  func.func @transform_8(%arg0: i32) -> (i32, i32) {
    %c0_i32 = arith.constant 0 : i32
    %c0_i32_0 = arith.constant 0 : i32
    return %c0_i32, %arg0 : i32, i32
  }
}

</mosaic_0001>

<llo_original>
// kernel: tpu_custom_call.1
$region0: #{tpu_custom_call.1}
  #allocation0 [shape = 'u32[]', space=smem, size = 0x4, offset = 0x4, fixed_abs, tag = 'smem constant byte address 0x4 - core index']
  #allocation1 [shape = 'u32[144,128]{1,0:T(1,128)}', space=vmem, size = 0x12000, scoped, tag = 'internal scratch']
  #allocation2 [shape = 'f32[1,1]{1,0:T(1,128)S(1)}', space=vmem, size = 0x200, scoped, tag = 'scoped memory for tpu_custom_call.1']
  %s0 = inlined_call_operand.hbm [shape: f32[64,512], index: 0, kind: input, shape index: {}]
  %s1 = inlined_call_operand.hbm [shape: f32[64,512], index: 1, kind: input, shape index: {}]
  %s2 = inlined_call_operand.vmem [shape: f32[32,64], index: 2, kind: input, shape index: {}]
  %s3 = inlined_call_operand.vmem [shape: f32[32,1], index: 3, kind: input, shape index: {}]
  %s4 = inlined_call_operand.vmem [shape: f32[32,64], index: 4, kind: input, shape index: {}]
  %s5 = inlined_call_operand.vmem [shape: f32[32,1], index: 5, kind: input, shape index: {}]
  %s6 = inlined_call_operand.vmem [shape: f32[32,1], index: 6, kind: input, shape index: {}]
  %s7 = inlined_call_operand.<no memory space> [shape: f32[1,1], index: 7, kind: input, shape index: {}]
  %s8 = inlined_call_operand.hbm [shape: f32[64,512], index: 8, kind: output, shape index: {}]
  %s9 = sld [smem:[#allocation0]]
  $region50: #{tpu_custom_call.1} parent=0
    _
  %s11 = ssub.s32 1, %s9
  %s12 = scalar_select 0, %s11, %s9
  %v13 = vstv %s7
  %14 = vst [vmem:[#allocation2] sm:$0x1] %v13
  $region1: #{tpu_custom_call.1} parent=0
    #allocation3 [shape = 'u8[131072]{0}', space=vmem, size = 0x20000, scoped, tag = 'input window, operand 0, single buffered']
    #allocation4 [shape = 's32[1]{0}', space=sflag, size = 0x4, scoped, tag = 'scoped memory for tpu_custom_call.1']
    #allocation5 [shape = 's32[1]{0}', space=sflag, size = 0x4, scoped, tag = 'scoped memory for tpu_custom_call.1']
    #allocation6 [shape = 'u8[131072]{0}', space=vmem, size = 0x20000, scoped, tag = 'input window, operand 1, single buffered']
    #allocation7 [shape = 's32[1]{0}', space=sflag, size = 0x4, scoped, tag = 'scoped memory for tpu_custom_call.1']
    #allocation8 [shape = 'u8[131072]{0}', space=vmem, size = 0x20000, scoped, tag = 'output window, operand 0, single buffered']
    %15 = vsyncpa [#allocation4], 0
    %16 = vsyncpa [#allocation7], 0
    %17 = vsyncpa [#allocation5], 0
    // Predicated region
    $region2: #{tpu_custom_call.1} parent=1 // pred_check
      _
    $region3: #{tpu_custom_call.1} parent=1 // pred_check_branch
      %19 = sbr.rel (0) target = $region5
    $region4: #{tpu_custom_call.1} parent=1 // pred_region
      %s21 = ssub.s32 4096, 4096
      %22 = vsyncadd [#allocation4], %s21
      %s23 = sshll.u32 [#allocation3], 4
      %s24 = int_to_ptr.vmem [resolvable:$true] %s23
      %29 = dma.hbm_to_vmem [thread:$0]  %s0, 4096, %s24, [#allocation4], 512, 512, 32
    $region5: #{tpu_custom_call.1} parent=1 // pred_fallthru
      _
    // Predicated region
    $region6: #{tpu_custom_call.1} parent=1 // pred_check
      _
    $region7: #{tpu_custom_call.1} parent=1 // pred_check_branch
      %31 = sbr.rel (0) target = $region9
    $region8: #{tpu_custom_call.1} parent=1 // pred_region
      %s33 = ssub.s32 4096, 4096
      %34 = vsyncadd [#allocation7], %s33
      %s35 = sshll.u32 [#allocation6], 4
      %s36 = int_to_ptr.vmem [resolvable:$true] %s35
      %41 = dma.hbm_to_vmem [thread:$0]  %s1, 4096, %s36, [#allocation7], 512, 512, 32
    $region9: #{tpu_custom_call.1} parent=1 // pred_fallthru
      _
    // Predicated region
    $region10: #{tpu_custom_call.1} parent=1 // pred_check
      _
    $region11: #{tpu_custom_call.1} parent=1 // pred_check_branch
      %43 = sbr.rel (0) target = $region13
    $region12: #{tpu_custom_call.1} parent=1 // pred_region
      _
    $region13: #{tpu_custom_call.1} parent=1 // pred_fallthru
      _
    // Predicated region
    $region14: #{tpu_custom_call.1} parent=1 // pred_check
      _
    $region15: #{tpu_custom_call.1} parent=1 // pred_check_branch
      %45 = sbr.rel (0) target = $region17
    $region16: #{tpu_custom_call.1} parent=1 // pred_region
      _
    $region17: #{tpu_custom_call.1} parent=1 // pred_fallthru
      _
    // Predicated region
    $region18: #{tpu_custom_call.1} parent=1 // pred_check
      _
    $region19: #{tpu_custom_call.1} parent=1 // pred_check_branch
      %47 = sbr.rel (0) target = $region21
    $region20: #{tpu_custom_call.1} parent=1 // pred_region
      _
    $region21: #{tpu_custom_call.1} parent=1 // pred_fallthru
      _
    // Predicated region
    $region22: #{tpu_custom_call.1} parent=1 // pred_check
      _
    $region23: #{tpu_custom_call.1} parent=1 // pred_check_branch
      %49 = sbr.rel (0) target = $region25
    $region24: #{tpu_custom_call.1} parent=1 // pred_region
      _
    $region25: #{tpu_custom_call.1} parent=1 // pred_fallthru
      _
    // Predicated region
    $region26: #{tpu_custom_call.1} parent=1 // pred_check
      _
    $region27: #{tpu_custom_call.1} parent=1 // pred_check_branch
      %51 = sbr.rel (0) target = $region29
    $region28: #{tpu_custom_call.1} parent=1 // pred_region
      _
    $region29: #{tpu_custom_call.1} parent=1 // pred_fallthru
      _
    // Predicated region
    $region30: #{tpu_custom_call.1} parent=1 // pred_check
      _
    $region31: #{tpu_custom_call.1} parent=1 // pred_check_branch
      %53 = sbr.rel (0) target = $region33
    $region32: #{tpu_custom_call.1} parent=1 // pred_region
      _
    $region33: #{tpu_custom_call.1} parent=1 // pred_fallthru
      _
    // Predicated region
    $region34: #{tpu_custom_call.1} parent=1 // pred_check
      _
    $region35: #{tpu_custom_call.1} parent=1 // pred_check_branch
      %55 = sbr.rel (0) target = $region37
    $region36: #{tpu_custom_call.1} parent=1 // pred_region
      %56 = dma.done [#allocation4], 4096
    $region37: #{tpu_custom_call.1} parent=1 // pred_fallthru
      _
    // Predicated region
    $region38: #{tpu_custom_call.1} parent=1 // pred_check
      _
    $region39: #{tpu_custom_call.1} parent=1 // pred_check_branch
      %58 = sbr.rel (0) target = $region41
    $region40: #{tpu_custom_call.1} parent=1 // pred_region
      %59 = dma.done [#allocation7], 4096
    $region41: #{tpu_custom_call.1} parent=1 // pred_fallthru
      _
    %v60 = vld [vmem:[#allocation3] sm:$0xff]
    %v61 = vld [vmem:[#allocation3 + $0x8] sm:$0xff]
    %v62 = vld [vmem:[#allocation3 + $0x10] sm:$0xff]
    %v63 = vld [vmem:[#allocation3 + $0x18] sm:$0xff]
    %v64 = vld [vmem:[#allocation3 + $0x20] sm:$0xff]
    %v65 = vld [vmem:[#allocation3 + $0x28] sm:$0xff]
    %v66 = vld [vmem:[#allocation3 + $0x30] sm:$0xff]
    %v67 = vld [vmem:[#allocation3 + $0x38] sm:$0xff]
    %v68 = vld [vmem:[#allocation3 + $0x40] sm:$0xff]
    %v69 = vld [vmem:[#allocation3 + $0x48] sm:$0xff]
    %v70 = vld [vmem:[#allocation3 + $0x50] sm:$0xff]
    %v71 = vld [vmem:[#allocation3 + $0x58] sm:$0xff]
    %v72 = vld [vmem:[#allocation3 + $0x60] sm:$0xff]
    %v73 = vld [vmem:[#allocation3 + $0x68] sm:$0xff]
    %v74 = vld [vmem:[#allocation3 + $0x70] sm:$0xff]
    %v75 = vld [vmem:[#allocation3 + $0x78] sm:$0xff]
    %v76 = vld [vmem:[#allocation3 + $0x80] sm:$0xff]
    %v77 = vld [vmem:[#allocation3 + $0x88] sm:$0xff]
    %v78 = vld [vmem:[#allocation3 + $0x90] sm:$0xff]
    %v79 = vld [vmem:[#allocation3 + $0x98] sm:$0xff]
    %v80 = vld [vmem:[#allocation3 + $0xa0] sm:$0xff]
    %v81 = vld [vmem:[#allocation3 + $0xa8] sm:$0xff]
    %v82 = vld [vmem:[#allocation3 + $0xb0] sm:$0xff]
    %v83 = vld [vmem:[#allocation3 + $0xb8] sm:$0xff]
    %v84 = vld [vmem:[#allocation3 + $0xc0] sm:$0xff]
    %v85 = vld [vmem:[#allocation3 + $0xc8] sm:$0xff]
    %v86 = vld [vmem:[#allocation3 + $0xd0] sm:$0xff]
    %v87 = vld [vmem:[#allocation3 + $0xd8] sm:$0xff]
    %v88 = vld [vmem:[#allocation3 + $0xe0] sm:$0xff]
    %v89 = vld [vmem:[#allocation3 + $0xe8] sm:$0xff]
    %v90 = vld [vmem:[#allocation3 + $0xf0] sm:$0xff]
    %v91 = vld [vmem:[#allocation3 + $0xf8] sm:$0xff]
    %v92 = vld [vmem:[#allocation6] sm:$0xff]
    %v93 = vld [vmem:[#allocation6 + $0x8] sm:$0xff]
    %v94 = vld [vmem:[#allocation6 + $0x10] sm:$0xff]
    %v95 = vld [vmem:[#allocation6 + $0x18] sm:$0xff]
    %v96 = vld [vmem:[#allocation6 + $0x20] sm:$0xff]
    %v97 = vld [vmem:[#allocation6 + $0x28] sm:$0xff]
    %v98 = vld [vmem:[#allocation6 + $0x30] sm:$0xff]
    %v99 = vld [vmem:[#allocation6 + $0x38] sm:$0xff]
    %v100 = vld [vmem:[#allocation6 + $0x40] sm:$0xff]
    %v101 = vld [vmem:[#allocation6 + $0x48] sm:$0xff]
    %v102 = vld [vmem:[#allocation6 + $0x50] sm:$0xff]
    %v103 = vld [vmem:[#allocation6 + $0x58] sm:$0xff]
    %v104 = vld [vmem:[#allocation6 + $0x60] sm:$0xff]
    %v105 = vld [vmem:[#allocation6 + $0x68] sm:$0xff]
    %v106 = vld [vmem:[#allocation6 + $0x70] sm:$0xff]
    %v107 = vld [vmem:[#allocation6 + $0x78] sm:$0xff]
    %v108 = vld [vmem:[#allocation6 + $0x80] sm:$0xff]
    %v109 = vld [vmem:[#allocation6 + $0x88] sm:$0xff]
    %v110 = vld [vmem:[#allocation6 + $0x90] sm:$0xff]
    %v111 = vld [vmem:[#allocation6 + $0x98] sm:$0xff]
    %v112 = vld [vmem:[#allocation6 + $0xa0] sm:$0xff]
    %v113 = vld [vmem:[#allocation6 + $0xa8] sm:$0xff]
    %v114 = vld [vmem:[#allocation6 + $0xb0] sm:$0xff]
    %v115 = vld [vmem:[#allocation6 + $0xb8] sm:$0xff]
    %v116 = vld [vmem:[#allocation6 + $0xc0] sm:$0xff]
    %v117 = vld [vmem:[#allocation6 + $0xc8] sm:$0xff]
    %v118 = vld [vmem:[#allocation6 + $0xd0] sm:$0xff]
    %v119 = vld [vmem:[#allocation6 + $0xd8] sm:$0xff]
    %v120 = vld [vmem:[#allocation6 + $0xe0] sm:$0xff]
    %v121 = vld [vmem:[#allocation6 + $0xe8] sm:$0xff]
    %v122 = vld [vmem:[#allocation6 + $0xf0] sm:$0xff]
    %v123 = vld [vmem:[#allocation6 + $0xf8] sm:$0xff]
    %v124 = vld [vmem:[%s2] sm:$0xff]
    %v125 = vld [vmem:[%s2 + $0x8] sm:$0xff]
    %v126 = vld [vmem:[%s2 + $0x10] sm:$0xff]
    %v127 = vld [vmem:[%s2 + $0x18] sm:$0xff]
    %v128 = vld [vmem:[%s3] sm:$0xff]
    %v129 = vld [vmem:[%s3 + $0x8] sm:$0xff]
    %v130 = vld [vmem:[%s3 + $0x10] sm:$0xff]
    %v131 = vld [vmem:[%s3 + $0x18] sm:$0xff]
    %133 = vset.pattern.permute.xlu0 0
    %134 = vperm.xlu0 %133, %v128
    %v135 = vpop.permute.xlu0 %134
    %138 = vset.pattern.permute.xlu0 0
    %139 = vperm.xlu0 %138, %v129
    %v140 = vpop.permute.xlu0 %139
    %143 = vset.pattern.permute.xlu0 0
    %144 = vperm.xlu0 %143, %v130
    %v145 = vpop.permute.xlu0 %144
    %148 = vset.pattern.permute.xlu0 0
    %149 = vperm.xlu0 %148, %v131
    %v150 = vpop.permute.xlu0 %149
    %vm152 = vcmask 523264
    %v154 = vsel %vm152, %v124, 0
    %v157 = vsel %vm152, %v125, 0
    %v160 = vsel %vm152, %v126, 0
    %v163 = vsel %vm152, %v127, 0
    %165 = vmatprep.subr.mxu0 %v61
    %166 = vmatpush1.msra.mxu0 %v60
    %167 = vmatprep.subr.mxu0 %v65
    %168 = vmatpush1.msra.mxu0 %v64
    %169 = vmatprep.subr.mxu0 %v69
    %170 = vmatpush1.msra.mxu0 %v68
    %171 = vmatprep.subr.mxu0 %v73
    %172 = vmatpush1.msra.mxu0 %v72
    %173 = vmatprep.subr.mxu0 %v77
    %174 = vmatpush1.msra.mxu0 %v76
    %175 = vmatprep.subr.mxu0 %v81
    %176 = vmatpush1.msra.mxu0 %v80
    %177 = vmatprep.subr.mxu0 %v85
    %178 = vmatpush1.msra.mxu0 %v84
    %179 = vmatprep.subr.mxu0 %v89
    %180 = vmatpush1.msra.mxu0 %v88
    %181 = vmatprep.subr.mxu0 0.0
    %182 = vmatpush1.msra.mxu0 0.0
    %183 = vmatprep.subr.mxu0 0.0
    %184 = vmatpush1.msra.mxu0 0.0
    %185 = vmatprep.subr.mxu0 0.0
    %186 = vmatpush1.msra.mxu0 0.0
    %187 = vmatprep.subr.mxu0 0.0
    %188 = vmatpush1.msra.mxu0 0.0
    %189 = vmatprep.subr.mxu0 0.0
    %190 = vmatpush1.msra.mxu0 0.0
    %191 = vmatprep.subr.mxu0 0.0
    %192 = vmatpush1.msra.mxu0 0.0
    %193 = vmatprep.subr.mxu0 0.0
    %194 = vmatpush1.msra.mxu0 0.0
    %195 = vmatprep.subr.mxu0 0.0
    %196 = vmatpush1.msra.mxu0 0.0
    %197 = vmatprep.subr.mxu0 0.0
    %198 = vmatpush1.msra.mxu0 0.0
    %199 = vmatprep.subr.mxu0 0.0
    %200 = vmatpush1.msra.mxu0 0.0
    %201 = vmatprep.subr.mxu0 0.0
    %202 = vmatpush1.msra.mxu0 0.0
    %203 = vmatprep.subr.mxu0 0.0
    %204 = vmatpush1.msra.mxu0 0.0
    %205 = vmatprep.subr.mxu0 0.0
    %206 = vmatpush1.msra.mxu0 0.0
    %207 = vmatprep.subr.mxu0 0.0
    %208 = vmatpush1.msra.mxu0 0.0
    %209 = vmatprep.subr.mxu0 0.0
    %210 = vmatpush1.msra.mxu0 0.0
    %211 = vmatprep.subr.mxu0 0.0
    %212 = vmatpush1.msra.mxu0 0.0
    %213 = vmatprep.subr.mxu0 0.0
    %214 = vmatpush1.msra.mxu0 0.0
    %215 = vmatprep.subr.mxu0 0.0
    %216 = vmatpush1.msra.mxu0 0.0
    %217 = vmatprep.subr.mxu0 0.0
    %218 = vmatpush1.msra.mxu0 0.0
    %219 = vmatprep.subr.mxu0 0.0
    %220 = vmatpush1.msra.mxu0 0.0
    %221 = vmatprep.subr.mxu0 0.0
    %222 = vmatpush1.msra.mxu0 0.0
    %223 = vmatprep.subr.mxu0 0.0
    %224 = vmatpush1.msra.mxu0 0.0
    %225 = vmatprep.subr.mxu0 0.0
    %226 = vmatpush1.msra.mxu0 0.0
    %227 = vmatprep.subr.mxu0 0.0
    %228 = vmatpush1.msra.mxu0 0.0
    %229 = vmatprep.mubr.f32.mxu0 0.0
    %230 = vmatmul.mubr.f32.gmra.mrb[0].mxu0 %v154
    %v231 = vpop.f32.mrb[0].mxu0
    %v232 = vadd.f32 %v135, %v231
    %v233 = vpop.f32.mrb[0].mxu0
    %v234 = vadd.f32 %v135, %v233
    %235 = vmatprep.mubr.f32.mxu0 0.0
    %236 = vmatmul.mubr.f32.gmra.mrb[0].mxu0 %v157
    %v237 = vpop.f32.mrb[0].mxu0
    %v238 = vadd.f32 %v140, %v237
    %v239 = vpop.f32.mrb[0].mxu0
    %v240 = vadd.f32 %v140, %v239
    %241 = vmatprep.mubr.f32.mxu0 0.0
    %242 = vmatmul.mubr.f32.gmra.mrb[0].mxu0 %v160
    %v243 = vpop.f32.mrb[0].mxu0
    %v244 = vadd.f32 %v145, %v243
    %v245 = vpop.f32.mrb[0].mxu0
    %v246 = vadd.f32 %v145, %v245
    %247 = vmatprep.mubr.f32.mxu0 0.0
    %248 = vmatmul.mubr.f32.gmra.mrb[0].mxu0 %v163
    %v249 = vpop.f32.mrb[0].mxu0
    %v250 = vadd.f32 %v150, %v249
    %v251 = vpop.f32.mrb[0].mxu0
    %v252 = vadd.f32 %v150, %v251
    %253 = vdwg.mxu0
    %254 = vmatprep.subr.mxu0 %v63
    %255 = vmatpush1.msra.mxu0 %v62
    %256 = vmatprep.subr.mxu0 %v67
    %257 = vmatpush1.msra.mxu0 %v66
    %258 = vmatprep.subr.mxu0 %v71
    %259 = vmatpush1.msra.mxu0 %v70
    %260 = vmatprep.subr.mxu0 %v75
    %261 = vmatpush1.msra.mxu0 %v74
    %262 = vmatprep.subr.mxu0 %v79
    %263 = vmatpush1.msra.mxu0 %v78
    %264 = vmatprep.subr.mxu0 %v83
    %265 = vmatpush1.msra.mxu0 %v82
    %266 = vmatprep.subr.mxu0 %v87
    %267 = vmatpush1.msra.mxu0 %v86
    %268 = vmatprep.subr.mxu0 %v91
    %269 = vmatpush1.msra.mxu0 %v90
    %270 = vmatprep.subr.mxu0 0.0
    %271 = vmatpush1.msra.mxu0 0.0
    %272 = vmatprep.subr.mxu0 0.0
    %273 = vmatpush1.msra.mxu0 0.0
    %274 = vmatprep.subr.mxu0 0.0
    %275 = vmatpush1.msra.mxu0 0.0
    %276 = vmatprep.subr.mxu0 0.0
    %277 = vmatpush1.msra.mxu0 0.0
    %278 = vmatprep.subr.mxu0 0.0
    %279 = vmatpush1.msra.mxu0 0.0
    %280 = vmatprep.subr.mxu0 0.0
    %281 = vmatpush1.msra.mxu0 0.0
    %282 = vmatprep.subr.mxu0 0.0
    %283 = vmatpush1.msra.mxu0 0.0
    %284 = vmatprep.subr.mxu0 0.0
    %285 = vmatpush1.msra.mxu0 0.0
    %286 = vmatprep.subr.mxu0 0.0
    %287 = vmatpush1.msra.mxu0 0.0
    %288 = vmatprep.subr.mxu0 0.0
    %289 = vmatpush1.msra.mxu0 0.0
    %290 = vmatprep.subr.mxu0 0.0
    %291 = vmatpush1.msra.mxu0 0.0
    %292 = vmatprep.subr.mxu0 0.0
    %293 = vmatpush1.msra.mxu0 0.0
    %294 = vmatprep.subr.mxu0 0.0
    %295 = vmatpush1.msra.mxu0 0.0
    %296 = vmatprep.subr.mxu0 0.0
    %297 = vmatpush1.msra.mxu0 0.0
    %298 = vmatprep.subr.mxu0 0.0
    %299 = vmatpush1.msra.mxu0 0.0
    %300 = vmatprep.subr.mxu0 0.0
    %301 = vmatpush1.msra.mxu0 0.0
    %302 = vmatprep.subr.mxu0 0.0
    %303 = vmatpush1.msra.mxu0 0.0
    %304 = vmatprep.subr.mxu0 0.0
    %305 = vmatpush1.msra.mxu0 0.0
    %306 = vmatprep.subr.mxu0 0.0
    %307 = vmatpush1.msra.mxu0 0.0
    %308 = vmatprep.subr.mxu0 0.0
    %309 = vmatpush1.msra.mxu0 0.0
    %310 = vmatprep.subr.mxu0 0.0
    %311 = vmatpush1.msra.mxu0 0.0
    %312 = vmatprep.subr.mxu0 0.0
    %313 = vmatpush1.msra.mxu0 0.0
    %314 = vmatprep.subr.mxu0 0.0
    %315 = vmatpush1.msra.mxu0 0.0
    %316 = vmatprep.subr.mxu0 0.0
    %317 = vmatpush1.msra.mxu0 0.0
    %318 = vmatprep.mubr.f32.mxu0 0.0
    %319 = vmatmul.mubr.f32.gmra.mrb[0].mxu0 %v154
    %v320 = vpop.f32.mrb[0].mxu0
    %v321 = vadd.f32 %v135, %v320
    %v322 = vpop.f32.mrb[0].mxu0
    %v323 = vadd.f32 %v135, %v322
    %324 = vmatprep.mubr.f32.mxu0 0.0
    %325 = vmatmul.mubr.f32.gmra.mrb[0].mxu0 %v157
    %v326 = vpop.f32.mrb[0].mxu0
    %v327 = vadd.f32 %v140, %v326
    %v328 = vpop.f32.mrb[0].mxu0
    %v329 = vadd.f32 %v140, %v328
    %330 = vmatprep.mubr.f32.mxu0 0.0
    %331 = vmatmul.mubr.f32.gmra.mrb[0].mxu0 %v160
    %v332 = vpop.f32.mrb[0].mxu0
    %v333 = vadd.f32 %v145, %v332
    %v334 = vpop.f32.mrb[0].mxu0
    %v335 = vadd.f32 %v145, %v334
    %336 = vmatprep.mubr.f32.mxu0 0.0
    %337 = vmatmul.mubr.f32.gmra.mrb[0].mxu0 %v163
    %v338 = vpop.f32.mrb[0].mxu0
    %v339 = vadd.f32 %v150, %v338
    %v340 = vpop.f32.mrb[0].mxu0
    %v341 = vadd.f32 %v150, %v340
    %342 = vdwg.mxu0
    %v343 = vld [vmem:[%s4] sm:$0xff]
    %v344 = vld [vmem:[%s4 + $0x8] sm:$0xff]
    %v345 = vld [vmem:[%s4 + $0x10] sm:$0xff]
    %v346 = vld [vmem:[%s4 + $0x18] sm:$0xff]
    %v347 = vld [vmem:[%s5] sm:$0xff]
    %v348 = vld [vmem:[%s5 + $0x8] sm:$0xff]
    %v349 = vld [vmem:[%s5 + $0x10] sm:$0xff]
    %v350 = vld [vmem:[%s5 + $0x18] sm:$0xff]
    %352 = vset.pattern.permute.xlu0 0
    %353 = vperm.xlu0 %352, %v347
    %v354 = vpop.permute.xlu0 %353
    %357 = vset.pattern.permute.xlu0 0
    %358 = vperm.xlu0 %357, %v348
    %v359 = vpop.permute.xlu0 %358
    %362 = vset.pattern.permute.xlu0 0
    %363 = vperm.xlu0 %362, %v349
    %v364 = vpop.permute.xlu0 %363
    %367 = vset.pattern.permute.xlu0 0
    %368 = vperm.xlu0 %367, %v350
    %v369 = vpop.permute.xlu0 %368
    %v372 = vsel %vm152, %v343, 0
    %v375 = vsel %vm152, %v344, 0
    %v378 = vsel %vm152, %v345, 0
    %v381 = vsel %vm152, %v346, 0
    %383 = vmatprep.subr.mxu0 %v93
    %384 = vmatpush1.msra.mxu0 %v92
    %385 = vmatprep.subr.mxu0 %v97
    %386 = vmatpush1.msra.mxu0 %v96
    %387 = vmatprep.subr.mxu0 %v101
    %388 = vmatpush1.msra.mxu0 %v100
    %389 = vmatprep.subr.mxu0 %v105
    %390 = vmatpush1.msra.mxu0 %v104
    %391 = vmatprep.subr.mxu0 %v109
    %392 = vmatpush1.msra.mxu0 %v108
    %393 = vmatprep.subr.mxu0 %v113
    %394 = vmatpush1.msra.mxu0 %v112
    %395 = vmatprep.subr.mxu0 %v117
    %396 = vmatpush1.msra.mxu0 %v116
    %397 = vmatprep.subr.mxu0 %v121
    %398 = vmatpush1.msra.mxu0 %v120
    %399 = vmatprep.subr.mxu0 0.0
    %400 = vmatpush1.msra.mxu0 0.0
    %401 = vmatprep.subr.mxu0 0.0
    %402 = vmatpush1.msra.mxu0 0.0
    %403 = vmatprep.subr.mxu0 0.0
    %404 = vmatpush1.msra.mxu0 0.0
    %405 = vmatprep.subr.mxu0 0.0
    %406 = vmatpush1.msra.mxu0 0.0
    %407 = vmatprep.subr.mxu0 0.0
    %408 = vmatpush1.msra.mxu0 0.0
    %409 = vmatprep.subr.mxu0 0.0
    %410 = vmatpush1.msra.mxu0 0.0
    %411 = vmatprep.subr.mxu0 0.0
    %412 = vmatpush1.msra.mxu0 0.0
    %413 = vmatprep.subr.mxu0 0.0
    %414 = vmatpush1.msra.mxu0 0.0
    %415 = vmatprep.subr.mxu0 0.0
    %416 = vmatpush1.msra.mxu0 0.0
    %417 = vmatprep.subr.mxu0 0.0
    %418 = vmatpush1.msra.mxu0 0.0
    %419 = vmatprep.subr.mxu0 0.0
    %420 = vmatpush1.msra.mxu0 0.0
    %421 = vmatprep.subr.mxu0 0.0
    %422 = vmatpush1.msra.mxu0 0.0
    %423 = vmatprep.subr.mxu0 0.0
    %424 = vmatpush1.msra.mxu0 0.0
    %425 = vmatprep.subr.mxu0 0.0
    %426 = vmatpush1.msra.mxu0 0.0
    %427 = vmatprep.subr.mxu0 0.0
    %428 = vmatpush1.msra.mxu0 0.0
    %429 = vmatprep.subr.mxu0 0.0
    %430 = vmatpush1.msra.mxu0 0.0
    %431 = vmatprep.subr.mxu0 0.0
    %432 = vmatpush1.msra.mxu0 0.0
    %433 = vmatprep.subr.mxu0 0.0
    %434 = vmatpush1.msra.mxu0 0.0
    %435 = vmatprep.subr.mxu0 0.0
    %436 = vmatpush1.msra.mxu0 0.0
    %437 = vmatprep.subr.mxu0 0.0
    %438 = vmatpush1.msra.mxu0 0.0
    %439 = vmatprep.subr.mxu0 0.0
    %440 = vmatpush1.msra.mxu0 0.0
    %441 = vmatprep.subr.mxu0 0.0
    %442 = vmatpush1.msra.mxu0 0.0
    %443 = vmatprep.subr.mxu0 0.0
    %444 = vmatpush1.msra.mxu0 0.0
    %445 = vmatprep.subr.mxu0 0.0
    %446 = vmatpush1.msra.mxu0 0.0
    %447 = vmatprep.mubr.f32.mxu0 0.0
    %448 = vmatmul.mubr.f32.gmra.mrb[0].mxu0 %v372
    %v449 = vpop.f32.mrb[0].mxu0
    %v450 = vadd.f32 %v354, %v449
    %v451 = vpop.f32.mrb[0].mxu0
    %v452 = vadd.f32 %v354, %v451
    %453 = vmatprep.mubr.f32.mxu0 0.0
    %454 = vmatmul.mubr.f32.gmra.mrb[0].mxu0 %v375
    %v455 = vpop.f32.mrb[0].mxu0
    %v456 = vadd.f32 %v359, %v455
    %v457 = vpop.f32.mrb[0].mxu0
    %v458 = vadd.f32 %v359, %v457
    %459 = vmatprep.mubr.f32.mxu0 0.0
    %460 = vmatmul.mubr.f32.gmra.mrb[0].mxu0 %v378
    %v461 = vpop.f32.mrb[0].mxu0
    %v462 = vadd.f32 %v364, %v461
    %v463 = vpop.f32.mrb[0].mxu0
    %v464 = vadd.f32 %v364, %v463
    %465 = vmatprep.mubr.f32.mxu0 0.0
    %466 = vmatmul.mubr.f32.gmra.mrb[0].mxu0 %v381
    %v467 = vpop.f32.mrb[0].mxu0
    %v468 = vadd.f32 %v369, %v467
    %v469 = vpop.f32.mrb[0].mxu0
    %v470 = vadd.f32 %v369, %v469
    %471 = vdwg.mxu0
    %472 = vmatprep.subr.mxu0 %v95
    %473 = vmatpush1.msra.mxu0 %v94
    %474 = vmatprep.subr.mxu0 %v99
    %475 = vmatpush1.msra.mxu0 %v98
    %476 = vmatprep.subr.mxu0 %v103
    %477 = vmatpush1.msra.mxu0 %v102
    %478 = vmatprep.subr.mxu0 %v107
    %479 = vmatpush1.msra.mxu0 %v106
    %480 = vmatprep.subr.mxu0 %v111
    %481 = vmatpush1.msra.mxu0 %v110
    %482 = vmatprep.subr.mxu0 %v115
    %483 = vmatpush1.msra.mxu0 %v114
    %484 = vmatprep.subr.mxu0 %v119
    %485 = vmatpush1.msra.mxu0 %v118
    %486 = vmatprep.subr.mxu0 %v123
    %487 = vmatpush1.msra.mxu0 %v122
    %488 = vmatprep.subr.mxu0 0.0
    %489 = vmatpush1.msra.mxu0 0.0
    %490 = vmatprep.subr.mxu0 0.0
    %491 = vmatpush1.msra.mxu0 0.0
    %492 = vmatprep.subr.mxu0 0.0
    %493 = vmatpush1.msra.mxu0 0.0
    %494 = vmatprep.subr.mxu0 0.0
    %495 = vmatpush1.msra.mxu0 0.0
    %496 = vmatprep.subr.mxu0 0.0
    %497 = vmatpush1.msra.mxu0 0.0
    %498 = vmatprep.subr.mxu0 0.0
    %499 = vmatpush1.msra.mxu0 0.0
    %500 = vmatprep.subr.mxu0 0.0
    %501 = vmatpush1.msra.mxu0 0.0
    %502 = vmatprep.subr.mxu0 0.0
    %503 = vmatpush1.msra.mxu0 0.0
    %504 = vmatprep.subr.mxu0 0.0
    %505 = vmatpush1.msra.mxu0 0.0
    %506 = vmatprep.subr.mxu0 0.0
    %507 = vmatpush1.msra.mxu0 0.0
    %508 = vmatprep.subr.mxu0 0.0
    %509 = vmatpush1.msra.mxu0 0.0
    %510 = vmatprep.subr.mxu0 0.0
    %511 = vmatpush1.msra.mxu0 0.0
    %512 = vmatprep.subr.mxu0 0.0
    %513 = vmatpush1.msra.mxu0 0.0
    %514 = vmatprep.subr.mxu0 0.0
    %515 = vmatpush1.msra.mxu0 0.0
    %516 = vmatprep.subr.mxu0 0.0
    %517 = vmatpush1.msra.mxu0 0.0
    %518 = vmatprep.subr.mxu0 0.0
    %519 = vmatpush1.msra.mxu0 0.0
    %520 = vmatprep.subr.mxu0 0.0
    %521 = vmatpush1.msra.mxu0 0.0
    %522 = vmatprep.subr.mxu0 0.0
    %523 = vmatpush1.msra.mxu0 0.0
    %524 = vmatprep.subr.mxu0 0.0
    %525 = vmatpush1.msra.mxu0 0.0
    %526 = vmatprep.subr.mxu0 0.0
    %527 = vmatpush1.msra.mxu0 0.0
    %528 = vmatprep.subr.mxu0 0.0
    %529 = vmatpush1.msra.mxu0 0.0
    %530 = vmatprep.subr.mxu0 0.0
    %531 = vmatpush1.msra.mxu0 0.0
    %532 = vmatprep.subr.mxu0 0.0
    %533 = vmatpush1.msra.mxu0 0.0
    %534 = vmatprep.subr.mxu0 0.0
    %535 = vmatpush1.msra.mxu0 0.0
    %536 = vmatprep.mubr.f32.mxu0 0.0
    %537 = vmatmul.mubr.f32.gmra.mrb[0].mxu0 %v372
    %v538 = vpop.f32.mrb[0].mxu0
    %v539 = vadd.f32 %v354, %v538
    %v540 = vpop.f32.mrb[0].mxu0
    %v541 = vadd.f32 %v354, %v540
    %542 = vmatprep.mubr.f32.mxu0 0.0
    %543 = vmatmul.mubr.f32.gmra.mrb[0].mxu0 %v375
    %v544 = vpop.f32.mrb[0].mxu0
    %v545 = vadd.f32 %v359, %v544
    %v546 = vpop.f32.mrb[0].mxu0
    %v547 = vadd.f32 %v359, %v546
    %548 = vmatprep.mubr.f32.mxu0 0.0
    %549 = vmatmul.mubr.f32.gmra.mrb[0].mxu0 %v378
    %v550 = vpop.f32.mrb[0].mxu0
    %v551 = vadd.f32 %v364, %v550
    %v552 = vpop.f32.mrb[0].mxu0
    %v553 = vadd.f32 %v364, %v552
    %554 = vmatprep.mubr.f32.mxu0 0.0
    %555 = vmatmul.mubr.f32.gmra.mrb[0].mxu0 %v381
    %v556 = vpop.f32.mrb[0].mxu0
    %v557 = vadd.f32 %v369, %v556
    %v558 = vpop.f32.mrb[0].mxu0
    %v559 = vadd.f32 %v369, %v558
    %560 = vdwg.mxu0
    %v561 = vadd.f32 %v232, %v450
    %v562 = vadd.f32 %v234, %v452
    %v563 = vadd.f32 %v321, %v539
    %v564 = vadd.f32 %v323, %v541
    %v565 = vadd.f32 %v238, %v456
    %v566 = vadd.f32 %v240, %v458
    %v567 = vadd.f32 %v327, %v545
    %v568 = vadd.f32 %v329, %v547
    %v569 = vadd.f32 %v244, %v462
    %v570 = vadd.f32 %v246, %v464
    %v571 = vadd.f32 %v333, %v551
    %v572 = vadd.f32 %v335, %v553
    %v573 = vadd.f32 %v250, %v468
    %v574 = vadd.f32 %v252, %v470
    %v575 = vadd.f32 %v339, %v557
    %v576 = vadd.f32 %v341, %v559
    %v577 = vmax.f32 %v561, 0.0
    %v578 = vmax.f32 %v562, 0.0
    %v579 = vmax.f32 %v563, 0.0
    %v580 = vmax.f32 %v564, 0.0
    %v581 = vmax.f32 %v565, 0.0
    %v582 = vmax.f32 %v566, 0.0
    %v583 = vmax.f32 %v567, 0.0
    %v584 = vmax.f32 %v568, 0.0
    %v585 = vmax.f32 %v569, 0.0
    %v586 = vmax.f32 %v570, 0.0
    %v587 = vmax.f32 %v571, 0.0
    %v588 = vmax.f32 %v572, 0.0
    %v589 = vmax.f32 %v573, 0.0
    %v590 = vmax.f32 %v574, 0.0
    %v591 = vmax.f32 %v575, 0.0
    %v592 = vmax.f32 %v576, 0.0
    %v593 = vld [vmem:[%s6] sm:$0xff]
    %v594 = vld [vmem:[%s6 + $0x8] sm:$0xff]
    %v595 = vld [vmem:[%s6 + $0x10] sm:$0xff]
    %v596 = vld [vmem:[%s6 + $0x18] sm:$0xff]
    %598 = vset.pattern.permute.xlu0 0
    %599 = vperm.xlu0 %598, %v593
    %v600 = vpop.permute.xlu0 %599
    %603 = vset.pattern.permute.xlu0 0
    %604 = vperm.xlu0 %603, %v594
    %v605 = vpop.permute.xlu0 %604
    %608 = vset.pattern.permute.xlu0 0
    %609 = vperm.xlu0 %608, %v595
    %v610 = vpop.permute.xlu0 %609
    %613 = vset.pattern.permute.xlu0 0
    %614 = vperm.xlu0 %613, %v596
    %v615 = vpop.permute.xlu0 %614
    %v617 = vmul.f32 %v577, %v600
    %v618 = vmul.f32 %v578, %v600
    %v619 = vmul.f32 %v579, %v600
    %v620 = vmul.f32 %v580, %v600
    %v621 = vmul.f32 %v581, %v605
    %v622 = vmul.f32 %v582, %v605
    %v623 = vmul.f32 %v583, %v605
    %v624 = vmul.f32 %v584, %v605
    %v625 = vmul.f32 %v585, %v610
    %v626 = vmul.f32 %v586, %v610
    %v627 = vmul.f32 %v587, %v610
    %v628 = vmul.f32 %v588, %v610
    %v629 = vmul.f32 %v589, %v615
    %v630 = vmul.f32 %v590, %v615
    %v631 = vmul.f32 %v591, %v615
    %v632 = vmul.f32 %v592, %v615
    %v633 = vadd.f32 %v617, %v621
    %v634 = vadd.f32 %v633, %v625
    %v635 = vadd.f32 %v634, %v629
    %v636 = vrot.slane %v635, 4
    %v637 = vadd.f32 %v635, %v636
    %v638 = vrot.slane %v637, 2
    %v639 = vadd.f32 %v637, %v638
    %v640 = vrot.slane %v639, 1
    %v641 = vadd.f32 %v639, %v640
    %v642 = vadd.f32 %v618, %v622
    %v643 = vadd.f32 %v642, %v626
    %v644 = vadd.f32 %v643, %v630
    %v645 = vrot.slane %v644, 4
    %v646 = vadd.f32 %v644, %v645
    %v647 = vrot.slane %v646, 2
    %v648 = vadd.f32 %v646, %v647
    %v649 = vrot.slane %v648, 1
    %v650 = vadd.f32 %v648, %v649
    %v651 = vadd.f32 %v619, %v623
    %v652 = vadd.f32 %v651, %v627
    %v653 = vadd.f32 %v652, %v631
    %v654 = vrot.slane %v653, 4
    %v655 = vadd.f32 %v653, %v654
    %v656 = vrot.slane %v655, 2
    %v657 = vadd.f32 %v655, %v656
    %v658 = vrot.slane %v657, 1
    %v659 = vadd.f32 %v657, %v658
    %v660 = vadd.f32 %v620, %v624
    %v661 = vadd.f32 %v660, %v628
    %v662 = vadd.f32 %v661, %v632
    %v663 = vrot.slane %v662, 4
    %v664 = vadd.f32 %v662, %v663
    %v665 = vrot.slane %v664, 2
    %v666 = vadd.f32 %v664, %v665
    %v667 = vrot.slane %v666, 1
    %v668 = vadd.f32 %v666, %v667
    %v669 = vld [vmem:[#allocation2] sm:$0x1]
    %671 = vset.pattern.permute.xlu0 0
    %672 = vperm.xlu0 %671, %v669
    %v673 = vpop.permute.xlu0 %672
    %v675 = vlaneseq
    %v676 = vshrl.u32 %v675, 7
    %v677 = vsub.s32 0, %v676
    %v678 = vrot.slane %v673, %v677
    %v679 = vadd.f32 %v641, %v678
    %v680 = vadd.f32 %v650, %v678
    %v681 = vadd.f32 %v659, %v678
    %v682 = vadd.f32 %v668, %v678
    %v683 = vsub.f32 0.0, %v679
    %v684 = vsub.f32 0.0, %v680
    %v685 = vsub.f32 0.0, %v681
    %v686 = vsub.f32 0.0, %v682
    %v687 = vmul.f32 %v683, 1.442695
    %v688 = vpow.pop %v687
    %v689 = vmul.f32 %v684, 1.442695
    %v690 = vpow.pop %v689
    %v691 = vmul.f32 %v685, 1.442695
    %v692 = vpow.pop %v691
    %v693 = vmul.f32 %v686, 1.442695
    %v694 = vpow.pop %v693
    %v695 = vadd.f32 %v688, 1.0
    %v696 = vadd.f32 %v690, 1.0
    %v697 = vadd.f32 %v692, 1.0
    %v698 = vadd.f32 %v694, 1.0
    %v699 = vrcp.pop %v695
    %v700 = vmul.f32 1.0, %v699
    %v701 = vrcp.pop %v696
    %v702 = vmul.f32 1.0, %v701
    %v703 = vrcp.pop %v697
    %v704 = vmul.f32 1.0, %v703
    %v705 = vrcp.pop %v698
    %v706 = vmul.f32 1.0, %v705
    %v707 = vmul.f32 %v92, %v700
    %v708 = vmul.f32 %v93, %v702
    %v709 = vmul.f32 %v94, %v704
    %v710 = vmul.f32 %v95, %v706
    %v711 = vmul.f32 %v96, %v700
    %v712 = vmul.f32 %v97, %v702
    %v713 = vmul.f32 %v98, %v704
    %v714 = vmul.f32 %v99, %v706
    %v715 = vmul.f32 %v100, %v700
    %v716 = vmul.f32 %v101, %v702
    %v717 = vmul.f32 %v102, %v704
    %v718 = vmul.f32 %v103, %v706
    %v719 = vmul.f32 %v104, %v700
    %v720 = vmul.f32 %v105, %v702
    %v721 = vmul.f32 %v106, %v704
    %v722 = vmul.f32 %v107, %v706
    %v723 = vmul.f32 %v108, %v700
    %v724 = vmul.f32 %v109, %v702
    %v725 = vmul.f32 %v110, %v704
    %v726 = vmul.f32 %v111, %v706
    %v727 = vmul.f32 %v112, %v700
    %v728 = vmul.f32 %v113, %v702
    %v729 = vmul.f32 %v114, %v704
    %v730 = vmul.f32 %v115, %v706
    %v731 = vmul.f32 %v116, %v700
    %v732 = vmul.f32 %v117, %v702
    %v733 = vmul.f32 %v118, %v704
    %v734 = vmul.f32 %v119, %v706
    %v735 = vmul.f32 %v120, %v700
    %v736 = vmul.f32 %v121, %v702
    %v737 = vmul.f32 %v122, %v704
    %v738 = vmul.f32 %v123, %v706
    %739 = vst [vmem:[#allocation8] sm:$0xff] %v707
    %740 = vst [vmem:[#allocation8 + $0x8] sm:$0xff] %v708
    %741 = vst [vmem:[#allocation8 + $0x10] sm:$0xff] %v709
    %742 = vst [vmem:[#allocation8 + $0x18] sm:$0xff] %v710
    %743 = vst [vmem:[#allocation8 + $0x20] sm:$0xff] %v711
    %744 = vst [vmem:[#allocation8 + $0x28] sm:$0xff] %v712
    %745 = vst [vmem:[#allocation8 + $0x30] sm:$0xff] %v713
    %746 = vst [vmem:[#allocation8 + $0x38] sm:$0xff] %v714
    %747 = vst [vmem:[#allocation8 + $0x40] sm:$0xff] %v715
    %748 = vst [vmem:[#allocation8 + $0x48] sm:$0xff] %v716
    %749 = vst [vmem:[#allocation8 + $0x50] sm:$0xff] %v717
    %750 = vst [vmem:[#allocation8 + $0x58] sm:$0xff] %v718
    %751 = vst [vmem:[#allocation8 + $0x60] sm:$0xff] %v719
    %752 = vst [vmem:[#allocation8 + $0x68] sm:$0xff] %v720
    %753 = vst [vmem:[#allocation8 + $0x70] sm:$0xff] %v721
    %754 = vst [vmem:[#allocation8 + $0x78] sm:$0xff] %v722
    %755 = vst [vmem:[#allocation8 + $0x80] sm:$0xff] %v723
    %756 = vst [vmem:[#allocation8 + $0x88] sm:$0xff] %v724
    %757 = vst [vmem:[#allocation8 + $0x90] sm:$0xff] %v725
    %758 = vst [vmem:[#allocation8 + $0x98] sm:$0xff] %v726
    %759 = vst [vmem:[#allocation8 + $0xa0] sm:$0xff] %v727
    %760 = vst [vmem:[#allocation8 + $0xa8] sm:$0xff] %v728
    %761 = vst [vmem:[#allocation8 + $0xb0] sm:$0xff] %v729
    %762 = vst [vmem:[#allocation8 + $0xb8] sm:$0xff] %v730
    %763 = vst [vmem:[#allocation8 + $0xc0] sm:$0xff] %v731
    %764 = vst [vmem:[#allocation8 + $0xc8] sm:$0xff] %v732
    %765 = vst [vmem:[#allocation8 + $0xd0] sm:$0xff] %v733
    %766 = vst [vmem:[#allocation8 + $0xd8] sm:$0xff] %v734
    %767 = vst [vmem:[#allocation8 + $0xe0] sm:$0xff] %v735
    %768 = vst [vmem:[#allocation8 + $0xe8] sm:$0xff] %v736
    %769 = vst [vmem:[#allocation8 + $0xf0] sm:$0xff] %v737
    %770 = vst [vmem:[#allocation8 + $0xf8] sm:$0xff] %v738
    // Predicated region
    $region42: #{tpu_custom_call.1} parent=1 // pred_check
      _
    $region43: #{tpu_custom_call.1} parent=1 // pred_check_branch
      %772 = sbr.rel (0) target = $region45
    $region44: #{tpu_custom_call.1} parent=1 // pred_region
      %s774 = ssub.s32 4096, 4096
      %775 = vsyncadd [#allocation5], %s774
      %s776 = sshll.u32 [#allocation8], 4
      %s777 = int_to_ptr.vmem [resolvable:$true] %s776
      %782 = dma.vmem_to_hbm [thread:$0]  %s777, 4096, %s8, [#allocation5], 512, 512, 32
    $region45: #{tpu_custom_call.1} parent=1 // pred_fallthru
      _
    // Predicated region
    $region46: #{tpu_custom_call.1} parent=1 // pred_check
      _
    $region47: #{tpu_custom_call.1} parent=1 // pred_check_branch
      %784 = sbr.rel (0) target = $region49
    $region48: #{tpu_custom_call.1} parent=1 // pred_region
      %785 = dma.done [#allocation5], 4096
    $region49: #{tpu_custom_call.1} parent=1 // pred_fallthru
      _
    %786 = vsyncpa [#allocation4], 1
    %787 = vsyncpa [#allocation7], 1
    %788 = vsyncpa [#allocation5], 1

</llo_original>
